<compile_context>
chip_gen: v5e
topology: v5e:2x2
jax: 0.10.0
libtpu: 0.0.40
codegen_flags: <defaults>
</compile_context>

<pallas_src>
import functools

import jax
import jax.numpy as jnp
from jax.experimental import pallas as pl
from jax.experimental.pallas import tpu as pltpu

IN_FEATURES = 784
NUM_CLASSES = 10
DEFAULT_TILE_B = 1024  # bf16 tile: 1024*784*2B ~= 1.6 MiB per buffer -> fits all gens


def _logreg_kernel(x_ref, w_ref, b_ref, o_ref):
    # Linear: (TILE_B, 784) bf16 @ (784, 10) bf16 -> f32 accumulate on the MXU.
    logits = jnp.dot(x_ref[...], w_ref[...], preferred_element_type=jnp.float32)
    logits = logits + b_ref[...]  # (1, 10) f32 bias, broadcast once per tile

    # Numerically stable log_softmax over the class axis (last dim), all in f32.
    m = jnp.max(logits, axis=-1, keepdims=True)
    shifted = logits - m
    lse = jnp.log(jnp.sum(jnp.exp(shifted), axis=-1, keepdims=True))
    o_ref[...] = (shifted - lse).astype(o_ref.dtype)


def _round_up(n, m):
    return ((n + m - 1) // m) * m


@functools.partial(jax.jit, static_argnames=("tile_b",))
def logistic_regression_forward(x_nchw, w_t, b, *, tile_b=DEFAULT_TILE_B):
    """x_nchw: (B, C, H, W) with C*H*W == 784; w_t: (784, 10); b: (10,)."""
    B = x_nchw.shape[0]

    # torch.flatten(x, 1); cast inputs to bf16 to halve HBM traffic (MXU is
    # natively bf16 on v5e/v6e/v7x; accumulation stays f32 in the kernel).
    x_flat = x_nchw.reshape(B, -1).astype(jnp.bfloat16)
    w_bf16 = w_t.astype(jnp.bfloat16)
    b2d = b.reshape(1, NUM_CLASSES).astype(jnp.float32)

    # Batch tiling: TILE_B is a multiple of 8; shrink it for tiny batches so
    # padding waste stays small, then pad B so the grid divides evenly.
    TILE_B = min(tile_b, _round_up(B, 8))
    B_pad = _round_up(B, TILE_B)
    if B_pad != B:
        x_flat = jnp.pad(x_flat, ((0, B_pad - B), (0, 0)))

    grid = (B_pad // TILE_B,)

    cost = pl.CostEstimate(
        flops=2 * B_pad * IN_FEATURES * NUM_CLASSES,
        transcendentals=B_pad * NUM_CLASSES,  # exp in the softmax epilogue
        bytes_accessed=(
            B_pad * IN_FEATURES * 2            # x (bf16)
            + IN_FEATURES * NUM_CLASSES * 2    # W (bf16)
            + B_pad * NUM_CLASSES * 4          # output (f32)
        ),
    )

    out = pl.pallas_call(
        _logreg_kernel,
        out_shape=jax.ShapeDtypeStruct((B_pad, NUM_CLASSES), jnp.float32),
        grid_spec=pltpu.PrefetchScalarGridSpec(
            num_scalar_prefetch=0,
            grid=grid,
            in_specs=[
                # x: one batch tile per grid step (double-buffered by Pallas).
                pl.BlockSpec((TILE_B, IN_FEATURES), lambda i: (i, 0)),
                # W, b: constant index_map -> stay resident in VMEM.
                pl.BlockSpec((IN_FEATURES, NUM_CLASSES), lambda i: (0, 0)),
                pl.BlockSpec((1, NUM_CLASSES), lambda i: (0, 0)),
            ],
            out_specs=pl.BlockSpec((TILE_B, NUM_CLASSES), lambda i: (i, 0)),
        ),
        compiler_params=pltpu.CompilerParams(
            # Batch tiles are fully independent -> shard across cores on v7x.
            dimension_semantics=("parallel",),
        ),
        cost_estimate=cost,
    )(x_flat, w_bf16, b2d)

    return out[:B]


if __name__ == "__main__":
    key = jax.random.PRNGKey(0)
    k_x, k_w, k_b = jax.random.split(key, 3)

    # Deterministic parameter init mirroring nn.Linear default:
    # U(-1/sqrt(in_features), 1/sqrt(in_features)) for weight and bias.
    bound = 1.0 / (IN_FEATURES ** 0.5)
    # Weight stored already transposed: (784, 10).
    w_t = jax.random.uniform(
        k_w, (IN_FEATURES, NUM_CLASSES), jnp.float32, -bound, bound
    )
    b = jax.random.uniform(k_b, (NUM_CLASSES,), jnp.float32, -bound, bound)

    # Small MNIST-like input: (batch=2, channels=1, 28, 28) -> 784 features.
    x = jax.random.normal(k_x, (2, 1, 28, 28), jnp.float32)

    out = logistic_regression_forward(x, w_t, b)
    out = jax.block_until_ready(out)
    assert out.shape == (2, NUM_CLASSES)

    # Sanity 1: log_softmax rows should exponentiate-and-sum to ~1
    # (epilogue is f32, so this is tight even with bf16 inputs).
    row_sums = jnp.exp(out).sum(axis=-1)
    assert bool(jnp.all(jnp.abs(row_sums - 1.0) < 1e-3))

    # Sanity 2: match a pure-JAX f32 reference within bf16 input tolerance.
    logits_ref = x.reshape(2, -1) @ w_t + b
    ref = jax.nn.log_softmax(logits_ref, axis=-1)
    assert bool(jnp.max(jnp.abs(out - ref)) < 5e-2)

    print("KERNEL_OK")
</pallas_src>

<mosaic_0001>
module attributes {stable_mosaic.version = 11 : i64} {
  func.func @_logreg_kernel(%arg0: i32, %arg1: memref<8x784xbf16, #tpu.memory_space<vmem>>, %arg2: memref<784x10xbf16, #tpu.memory_space<vmem>>, %arg3: memref<1x10xf32, #tpu.memory_space<vmem>>, %arg4: memref<8x10xf32, #tpu.memory_space<vmem>>) attributes {dimension_semantics = [#tpu.dimension_semantics<parallel>], iteration_bounds = array<i64: 1>, scalar_prefetch = 0 : i64, scratch_operands = 0 : i64, tpu.core_type = #tpu.core_type<tc>, window_params = [{transform_indices = @transform_0, window_bounds = array<i64: 8, 784>}, {pipeline_mode = #tpu.pipeline_mode<synchronous>, transform_indices = @transform_1, window_bounds = array<i64: 784, 10>}, {pipeline_mode = #tpu.pipeline_mode<synchronous>, transform_indices = @transform_2, window_bounds = array<i64: 1, 10>}, {transform_indices = @transform_3, window_bounds = array<i64: 8, 10>}]} {
    %c0 = arith.constant 0 : index
    %c0_0 = arith.constant 0 : index
    %0 = vector.load %arg1[%c0, %c0_0] : memref<8x784xbf16, #tpu.memory_space<vmem>>, vector<8x784xbf16>
    %c0_1 = arith.constant 0 : index
    %c0_2 = arith.constant 0 : index
    %1 = vector.load %arg2[%c0_1, %c0_2] : memref<784x10xbf16, #tpu.memory_space<vmem>>, vector<784x10xbf16>
    %cst = arith.constant dense<0.000000e+00> : vector<8x10xf32>
    %2 = tpu.matmul %0, %1, %cst {dimension_numbers = #tpu.dot_dimension_numbers<[1], [0], [0], [1], [0, 0, 1, 1], [], []>} : vector<8x784xbf16>, vector<784x10xbf16>, vector<8x10xf32> -> vector<8x10xf32>
    %c0_3 = arith.constant 0 : index
    %c0_4 = arith.constant 0 : index
    %3 = vector.load %arg3[%c0_3, %c0_4] : memref<1x10xf32, #tpu.memory_space<vmem>>, vector<1x10xf32>
    %4 = vector.broadcast %3 : vector<1x10xf32> to vector<8x10xf32>
    %5 = arith.addf %2, %4 : vector<8x10xf32>
    %cst_5 = arith.constant dense<0xFF800000> : vector<8xf32>
    %6 = vector.multi_reduction <maximumf>, %5, %cst_5 [1] : vector<8x10xf32> to vector<8xf32>
    %7 = vector.shape_cast %6 : vector<8xf32> to vector<8x1xf32>
    %8 = vector.broadcast %7 : vector<8x1xf32> to vector<8x10xf32>
    %9 = arith.subf %5, %8 : vector<8x10xf32>
    %10 = math.exp %9 : vector<8x10xf32>
    %cst_6 = arith.constant dense<0.000000e+00> : vector<8xf32>
    %11 = vector.multi_reduction <add>, %10, %cst_6 [1] : vector<8x10xf32> to vector<8xf32>
    %12 = vector.shape_cast %11 : vector<8xf32> to vector<8x1xf32>
    %13 = math.log %12 : vector<8x1xf32>
    %14 = vector.broadcast %13 : vector<8x1xf32> to vector<8x10xf32>
    %15 = arith.subf %9, %14 : vector<8x10xf32>
    %c0_7 = arith.constant 0 : index
    %c0_8 = arith.constant 0 : index
    %16 = vector.load %arg4[%c0_7, %c0_8] : memref<8x10xf32, #tpu.memory_space<vmem>>, vector<8x10xf32>
    tpu.vector_store %arg4[%c0_7, %c0_8], %15 {strides = array<i32>} : memref<8x10xf32, #tpu.memory_space<vmem>>, vector<8x10xf32>,
    return
  }
  func.func @transform_0(%arg0: i32) -> (i32, i32) {
    %c0_i32 = arith.constant 0 : i32
    %c0_i32_0 = arith.constant 0 : i32
    return %arg0, %c0_i32 : i32, i32
  }
  func.func @transform_1(%arg0: i32) -> (i32, i32) {
    %c0_i32 = arith.constant 0 : i32
    %c0_i32_0 = arith.constant 0 : i32
    %c0_i32_1 = arith.constant 0 : i32
    return %c0_i32, %c0_i32_0 : i32, i32
  }
  func.func @transform_2(%arg0: i32) -> (i32, i32) {
    %c0_i32 = arith.constant 0 : i32
    %c0_i32_0 = arith.constant 0 : i32
    %c0_i32_1 = arith.constant 0 : i32
    return %c0_i32, %c0_i32_0 : i32, i32
  }
  func.func @transform_3(%arg0: i32) -> (i32, i32) {
    %c0_i32 = arith.constant 0 : i32
    %c0_i32_0 = arith.constant 0 : i32
    return %arg0, %c0_i32 : i32, i32
  }
}

</mosaic_0001>

<llo_original>
// kernel: logistic_regression_forward.1
$region0: #{logistic_regression_forward.1}
  #allocation0 [shape = 'u32[]', space=smem, size = 0x4, offset = 0x4, fixed_abs, tag = 'smem constant byte address 0x4 - core index']
  #allocation1 [shape = 'u32[72,128]{1,0:T(1,128)}', space=vmem, size = 0x9000, scoped, tag = 'internal scratch']
  %s0 = inlined_call_operand.vmem [shape: bf16[8,784], index: 0, kind: input, shape index: {}]
  %s1 = inlined_call_operand.vmem [shape: bf16[784,10], index: 1, kind: input, shape index: {}]
  %s2 = inlined_call_operand.vmem [shape: f32[1,10], index: 2, kind: input, shape index: {}]
  %s3 = inlined_call_operand.vmem [shape: f32[8,10], index: 3, kind: output, shape index: {}]
  %s4 = sld [smem:[#allocation0]]
  $region22: #{logistic_regression_forward.1} parent=0
    _
  %s6 = ssub.s32 1, %s4
  %s7 = scalar_select 0, %s6, %s4
  // Predicated region
  $region2: #{logistic_regression_forward.1} parent=0 // pred_check
    _
  $region3: #{logistic_regression_forward.1} parent=0 // pred_check_branch
    %9 = sbr.rel (0) target = $region5
  $region4: #{logistic_regression_forward.1} parent=0 // pred_region
    _
  $region5: #{logistic_regression_forward.1} parent=0 // pred_fallthru
    _
  // Predicated region
  $region6: #{logistic_regression_forward.1} parent=0 // pred_check
    _
  $region7: #{logistic_regression_forward.1} parent=0 // pred_check_branch
    %11 = sbr.rel (0) target = $region9
  $region8: #{logistic_regression_forward.1} parent=0 // pred_region
    _
  $region9: #{logistic_regression_forward.1} parent=0 // pred_fallthru
    _
  // Predicated region
  $region10: #{logistic_regression_forward.1} parent=0 // pred_check
    _
  $region11: #{logistic_regression_forward.1} parent=0 // pred_check_branch
    %13 = sbr.rel (0) target = $region13
  $region12: #{logistic_regression_forward.1} parent=0 // pred_region
    _
  $region13: #{logistic_regression_forward.1} parent=0 // pred_fallthru
    _
  %v15 = vld [vmem:[%s0] sm:$0xff]
  %v16 = vld [vmem:[%s0 + $0x8] sm:$0xff]
  %v17 = vld [vmem:[%s0 + $0x10] sm:$0xff]
  %v18 = vld [vmem:[%s0 + $0x18] sm:$0xf]
  %v19 = vld [vmem:[%s1] sm:$0xf]
  %v20 = vld [vmem:[%s1 + $0x4] sm:$0xf]
  %v21 = vld [vmem:[%s1 + $0x8] sm:$0xf]
  %v22 = vld [vmem:[%s1 + $0xc] sm:$0xf]
  %v23 = vld [vmem:[%s1 + $0x10] sm:$0xf]
  %v24 = vld [vmem:[%s1 + $0x14] sm:$0xf]
  %v25 = vld [vmem:[%s1 + $0x18] sm:$0xf]
  %v26 = vld [vmem:[%s1 + $0x1c] sm:$0xf]
  %v27 = vld [vmem:[%s1 + $0x20] sm:$0xf]
  %v28 = vld [vmem:[%s1 + $0x24] sm:$0xf]
  %v29 = vld [vmem:[%s1 + $0x28] sm:$0xf]
  %v30 = vld [vmem:[%s1 + $0x2c] sm:$0xf]
  %v31 = vld [vmem:[%s1 + $0x30] sm:$0xf]
  %v32 = vld [vmem:[%s1 + $0x34] sm:$0xf]
  %v33 = vld [vmem:[%s1 + $0x38] sm:$0xf]
  %v34 = vld [vmem:[%s1 + $0x3c] sm:$0xf]
  %v35 = vld [vmem:[%s1 + $0x40] sm:$0xf]
  %v36 = vld [vmem:[%s1 + $0x44] sm:$0xf]
  %v37 = vld [vmem:[%s1 + $0x48] sm:$0xf]
  %v38 = vld [vmem:[%s1 + $0x4c] sm:$0xf]
  %v39 = vld [vmem:[%s1 + $0x50] sm:$0xf]
  %v40 = vld [vmem:[%s1 + $0x54] sm:$0xf]
  %v41 = vld [vmem:[%s1 + $0x58] sm:$0xf]
  %v42 = vld [vmem:[%s1 + $0x5c] sm:$0xf]
  %v43 = vld [vmem:[%s1 + $0x60] sm:$0xf]
  %v44 = vld [vmem:[%s1 + $0x64] sm:$0xf]
  %v45 = vld [vmem:[%s1 + $0x68] sm:$0xf]
  %v46 = vld [vmem:[%s1 + $0x6c] sm:$0xf]
  %v47 = vld [vmem:[%s1 + $0x70] sm:$0xf]
  %v48 = vld [vmem:[%s1 + $0x74] sm:$0xf]
  %v49 = vld [vmem:[%s1 + $0x78] sm:$0xf]
  %v50 = vld [vmem:[%s1 + $0x7c] sm:$0xf]
  %v51 = vld [vmem:[%s1 + $0x80] sm:$0xf]
  %v52 = vld [vmem:[%s1 + $0x84] sm:$0xf]
  %v53 = vld [vmem:[%s1 + $0x88] sm:$0xf]
  %v54 = vld [vmem:[%s1 + $0x8c] sm:$0xf]
  %v55 = vld [vmem:[%s1 + $0x90] sm:$0xf]
  %v56 = vld [vmem:[%s1 + $0x94] sm:$0xf]
  %v57 = vld [vmem:[%s1 + $0x98] sm:$0xf]
  %v58 = vld [vmem:[%s1 + $0x9c] sm:$0xf]
  %v59 = vld [vmem:[%s1 + $0xa0] sm:$0xf]
  %v60 = vld [vmem:[%s1 + $0xa4] sm:$0xf]
  %v61 = vld [vmem:[%s1 + $0xa8] sm:$0xf]
  %v62 = vld [vmem:[%s1 + $0xac] sm:$0xf]
  %v63 = vld [vmem:[%s1 + $0xb0] sm:$0xf]
  %v64 = vld [vmem:[%s1 + $0xb4] sm:$0xf]
  %v65 = vld [vmem:[%s1 + $0xb8] sm:$0xf]
  %v66 = vld [vmem:[%s1 + $0xbc] sm:$0xf]
  %v67 = vld [vmem:[%s1 + $0xc0] sm:$0xf]
  %v68 = vld [vmem:[%s1 + $0xc4] sm:$0xf]
  %v69 = vld [vmem:[%s1 + $0xc8] sm:$0xf]
  %v70 = vld [vmem:[%s1 + $0xcc] sm:$0xf]
  %v71 = vld [vmem:[%s1 + $0xd0] sm:$0xf]
  %v72 = vld [vmem:[%s1 + $0xd4] sm:$0xf]
  %v73 = vld [vmem:[%s1 + $0xd8] sm:$0xf]
  %v74 = vld [vmem:[%s1 + $0xdc] sm:$0xf]
  %v75 = vld [vmem:[%s1 + $0xe0] sm:$0xf]
  %v76 = vld [vmem:[%s1 + $0xe4] sm:$0xf]
  %v77 = vld [vmem:[%s1 + $0xe8] sm:$0xf]
  %v78 = vld [vmem:[%s1 + $0xec] sm:$0xf]
  %v79 = vld [vmem:[%s1 + $0xf0] sm:$0xf]
  %v80 = vld [vmem:[%s1 + $0xf4] sm:$0xf]
  %v81 = vld [vmem:[%s1 + $0xf8] sm:$0xf]
  %v82 = vld [vmem:[%s1 + $0xfc] sm:$0xf]
  %v83 = vld [vmem:[%s1 + $0x100] sm:$0xf]
  %v84 = vld [vmem:[%s1 + $0x104] sm:$0xf]
  %v85 = vld [vmem:[%s1 + $0x108] sm:$0xf]
  %v86 = vld [vmem:[%s1 + $0x10c] sm:$0xf]
  %v87 = vld [vmem:[%s1 + $0x110] sm:$0xf]
  %v88 = vld [vmem:[%s1 + $0x114] sm:$0xf]
  %v89 = vld [vmem:[%s1 + $0x118] sm:$0xf]
  %v90 = vld [vmem:[%s1 + $0x11c] sm:$0xf]
  %v91 = vld [vmem:[%s1 + $0x120] sm:$0xf]
  %v92 = vld [vmem:[%s1 + $0x124] sm:$0xf]
  %v93 = vld [vmem:[%s1 + $0x128] sm:$0xf]
  %v94 = vld [vmem:[%s1 + $0x12c] sm:$0xf]
  %v95 = vld [vmem:[%s1 + $0x130] sm:$0xf]
  %v96 = vld [vmem:[%s1 + $0x134] sm:$0xf]
  %v97 = vld [vmem:[%s1 + $0x138] sm:$0xf]
  %v98 = vld [vmem:[%s1 + $0x13c] sm:$0xf]
  %v99 = vld [vmem:[%s1 + $0x140] sm:$0xf]
  %v100 = vld [vmem:[%s1 + $0x144] sm:$0xf]
  %v101 = vld [vmem:[%s1 + $0x148] sm:$0xf]
  %v102 = vld [vmem:[%s1 + $0x14c] sm:$0xf]
  %v103 = vld [vmem:[%s1 + $0x150] sm:$0xf]
  %v104 = vld [vmem:[%s1 + $0x154] sm:$0xf]
  %v105 = vld [vmem:[%s1 + $0x158] sm:$0xf]
  %v106 = vld [vmem:[%s1 + $0x15c] sm:$0xf]
  %v107 = vld [vmem:[%s1 + $0x160] sm:$0xf]
  %v108 = vld [vmem:[%s1 + $0x164] sm:$0xf]
  %v109 = vld [vmem:[%s1 + $0x168] sm:$0xf]
  %v110 = vld [vmem:[%s1 + $0x16c] sm:$0xf]
  %v111 = vld [vmem:[%s1 + $0x170] sm:$0xf]
  %v112 = vld [vmem:[%s1 + $0x174] sm:$0xf]
  %v113 = vld [vmem:[%s1 + $0x178] sm:$0xf]
  %v114 = vld [vmem:[%s1 + $0x17c] sm:$0xf]
  %v115 = vld [vmem:[%s1 + $0x180] sm:$0xf]
  %v116 = vld [vmem:[%s1 + $0x184] sm:$0xf]
  %v117 = vld [vmem:[%s2] sm:$0x1]
  %v119 = vperm.slane %v117, 0
  %v125 = vunpack.c.l.b16 %v15
  %v126 = vunpack.c.h.b16 %v15
  %v127 = vunpack.c.l.b16 %v16
  %v128 = vunpack.c.h.b16 %v16
  %v129 = vunpack.c.l.b16 %v17
  %v130 = vunpack.c.h.b16 %v17
  %v131 = vunpack.c.l.b16 %v18
  %v132 = vpack.c.b16 %v125, %v125
  %v133 = vpack.c.b16 %v126, %v126
  %v134 = vpack.c.b16 %v127, %v127
  %v135 = vpack.c.b16 %v128, %v128
  %v136 = vpack.c.b16 %v129, %v129
  %v137 = vpack.c.b16 %v130, %v130
  %v138 = vpack.c.b16 %v131, %v131
  %v243 = vunpack.c.l.b16 %v19
  %v244 = vunpack.c.l.b16 %v20
  %v245 = vunpack.c.l.b16 %v21
  %v246 = vunpack.c.l.b16 %v22
  %v247 = vunpack.c.l.b16 %v23
  %v248 = vunpack.c.l.b16 %v24
  %v249 = vunpack.c.l.b16 %v25
  %v250 = vunpack.c.l.b16 %v26
  %v251 = vunpack.c.l.b16 %v27
  %v252 = vunpack.c.l.b16 %v28
  %v253 = vunpack.c.l.b16 %v29
  %v254 = vunpack.c.l.b16 %v30
  %v255 = vunpack.c.l.b16 %v31
  %v256 = vunpack.c.l.b16 %v32
  %v257 = vunpack.c.l.b16 %v33
  %v258 = vunpack.c.l.b16 %v34
  %v259 = vunpack.c.l.b16 %v35
  %v260 = vunpack.c.l.b16 %v36
  %v261 = vunpack.c.l.b16 %v37
  %v262 = vunpack.c.l.b16 %v38
  %v263 = vunpack.c.l.b16 %v39
  %v264 = vunpack.c.l.b16 %v40
  %v265 = vunpack.c.l.b16 %v41
  %v266 = vunpack.c.l.b16 %v42
  %v267 = vunpack.c.l.b16 %v43
  %v268 = vunpack.c.l.b16 %v44
  %v269 = vunpack.c.l.b16 %v45
  %v270 = vunpack.c.l.b16 %v46
  %v271 = vunpack.c.l.b16 %v47
  %v272 = vunpack.c.l.b16 %v48
  %v273 = vunpack.c.l.b16 %v49
  %v274 = vunpack.c.l.b16 %v50
  %v275 = vunpack.c.l.b16 %v51
  %v276 = vunpack.c.l.b16 %v52
  %v277 = vunpack.c.l.b16 %v53
  %v278 = vunpack.c.l.b16 %v54
  %v279 = vunpack.c.l.b16 %v55
  %v280 = vunpack.c.l.b16 %v56
  %v281 = vunpack.c.l.b16 %v57
  %v282 = vunpack.c.l.b16 %v58
  %v283 = vunpack.c.l.b16 %v59
  %v284 = vunpack.c.l.b16 %v60
  %v285 = vunpack.c.l.b16 %v61
  %v286 = vunpack.c.l.b16 %v62
  %v287 = vunpack.c.l.b16 %v63
  %v288 = vunpack.c.l.b16 %v64
  %v289 = vunpack.c.l.b16 %v65
  %v290 = vunpack.c.l.b16 %v66
  %v291 = vunpack.c.l.b16 %v67
  %v292 = vunpack.c.l.b16 %v68
  %v293 = vunpack.c.l.b16 %v69
  %v294 = vunpack.c.l.b16 %v70
  %v295 = vunpack.c.l.b16 %v71
  %v296 = vunpack.c.l.b16 %v72
  %v297 = vunpack.c.l.b16 %v73
  %v298 = vunpack.c.l.b16 %v74
  %v299 = vunpack.c.l.b16 %v75
  %v300 = vunpack.c.l.b16 %v76
  %v301 = vunpack.c.l.b16 %v77
  %v302 = vunpack.c.l.b16 %v78
  %v303 = vunpack.c.l.b16 %v79
  %v304 = vunpack.c.l.b16 %v80
  %v305 = vunpack.c.l.b16 %v81
  %v306 = vunpack.c.l.b16 %v82
  %v307 = vunpack.c.l.b16 %v83
  %v308 = vunpack.c.l.b16 %v84
  %v309 = vunpack.c.l.b16 %v85
  %v310 = vunpack.c.l.b16 %v86
  %v311 = vunpack.c.l.b16 %v87
  %v312 = vunpack.c.l.b16 %v88
  %v313 = vunpack.c.l.b16 %v89
  %v314 = vunpack.c.l.b16 %v90
  %v315 = vunpack.c.l.b16 %v91
  %v316 = vunpack.c.l.b16 %v92
  %v317 = vunpack.c.l.b16 %v93
  %v318 = vunpack.c.l.b16 %v94
  %v319 = vunpack.c.l.b16 %v95
  %v320 = vunpack.c.l.b16 %v96
  %v321 = vunpack.c.l.b16 %v97
  %v322 = vunpack.c.l.b16 %v98
  %v323 = vunpack.c.l.b16 %v99
  %v324 = vunpack.c.l.b16 %v100
  %v325 = vunpack.c.l.b16 %v101
  %v326 = vunpack.c.l.b16 %v102
  %v327 = vunpack.c.l.b16 %v103
  %v328 = vunpack.c.l.b16 %v104
  %v329 = vunpack.c.l.b16 %v105
  %v330 = vunpack.c.l.b16 %v106
  %v331 = vunpack.c.l.b16 %v107
  %v332 = vunpack.c.l.b16 %v108
  %v333 = vunpack.c.l.b16 %v109
  %v334 = vunpack.c.l.b16 %v110
  %v335 = vunpack.c.l.b16 %v111
  %v336 = vunpack.c.l.b16 %v112
  %v337 = vunpack.c.l.b16 %v113
  %v338 = vunpack.c.l.b16 %v114
  %v339 = vunpack.c.l.b16 %v115
  %v340 = vunpack.c.l.b16 %v116
  %v341 = vpack.c.b16 %v244, %v243
  %v342 = vpack.c.b16 %v246, %v245
  %v343 = vpack.c.b16 %v248, %v247
  %v344 = vpack.c.b16 %v250, %v249
  %v345 = vpack.c.b16 %v252, %v251
  %v346 = vpack.c.b16 %v254, %v253
  %v347 = vpack.c.b16 %v256, %v255
  %v348 = vpack.c.b16 %v258, %v257
  %v349 = vpack.c.b16 %v260, %v259
  %v350 = vpack.c.b16 %v262, %v261
  %v351 = vpack.c.b16 %v264, %v263
  %v352 = vpack.c.b16 %v266, %v265
  %v353 = vpack.c.b16 %v268, %v267
  %v354 = vpack.c.b16 %v270, %v269
  %v355 = vpack.c.b16 %v272, %v271
  %v356 = vpack.c.b16 %v274, %v273
  %v357 = vpack.c.b16 %v276, %v275
  %v358 = vpack.c.b16 %v278, %v277
  %v359 = vpack.c.b16 %v280, %v279
  %v360 = vpack.c.b16 %v282, %v281
  %v361 = vpack.c.b16 %v284, %v283
  %v362 = vpack.c.b16 %v286, %v285
  %v363 = vpack.c.b16 %v288, %v287
  %v364 = vpack.c.b16 %v290, %v289
  %v365 = vpack.c.b16 %v292, %v291
  %v366 = vpack.c.b16 %v294, %v293
  %v367 = vpack.c.b16 %v296, %v295
  %v368 = vpack.c.b16 %v298, %v297
  %v369 = vpack.c.b16 %v300, %v299
  %v370 = vpack.c.b16 %v302, %v301
  %v371 = vpack.c.b16 %v304, %v303
  %v372 = vpack.c.b16 %v306, %v305
  %v373 = vpack.c.b16 %v308, %v307
  %v374 = vpack.c.b16 %v310, %v309
  %v375 = vpack.c.b16 %v312, %v311
  %v376 = vpack.c.b16 %v314, %v313
  %v377 = vpack.c.b16 %v316, %v315
  %v378 = vpack.c.b16 %v318, %v317
  %v379 = vpack.c.b16 %v320, %v319
  %v380 = vpack.c.b16 %v322, %v321
  %v381 = vpack.c.b16 %v324, %v323
  %v382 = vpack.c.b16 %v326, %v325
  %v383 = vpack.c.b16 %v328, %v327
  %v384 = vpack.c.b16 %v330, %v329
  %v385 = vpack.c.b16 %v332, %v331
  %v386 = vpack.c.b16 %v334, %v333
  %v387 = vpack.c.b16 %v336, %v335
  %v388 = vpack.c.b16 %v338, %v337
  %v389 = vpack.c.b16 %v340, %v339
  %vm439 = vcmask 130048
  %v441 = vsel %vm439, %v138, 0
  %443 = vmatpush.bf16.msra.mxu0 %v348
  %444 = vmatpush.bf16.msra.mxu0 %v347
  %445 = vmatpush.bf16.msra.mxu0 %v346
  %446 = vmatpush.bf16.msra.mxu0 %v345
  %447 = vmatpush.bf16.msra.mxu0 %v344
  %448 = vmatpush.bf16.msra.mxu0 %v343
  %449 = vmatpush.bf16.msra.mxu0 %v342
  %450 = vmatpush.bf16.msra.mxu0 %v341
  %451 = vmatmul.bf16.gmra.mxu0 %v132
  %v452 = vpop.f32.mrf.mxu0
  %v453 = vadd.f32 %v119, %v452
  %v454 = vpop.f32.mrf.mxu0
  %455 = vdwg.mxu0
  %456 = vmatpush.bf16.msra.mxu0 %v356
  %457 = vmatpush.bf16.msra.mxu0 %v355
  %458 = vmatpush.bf16.msra.mxu0 %v354
  %459 = vmatpush.bf16.msra.mxu0 %v353
  %460 = vmatpush.bf16.msra.mxu0 %v352
  %461 = vmatpush.bf16.msra.mxu0 %v351
  %462 = vmatpush.bf16.msra.mxu0 %v350
  %463 = vmatpush.bf16.msra.mxu0 %v349
  %464 = vmatmul.bf16.gmra.mxu0 %v133
  %v465 = vpop.f32.mrf.mxu0
  %v466 = vadd.f32 %v453, %v465
  %v467 = vpop.f32.mrf.mxu0
  %468 = vdwg.mxu0
  %469 = vmatpush.bf16.msra.mxu0 %v364
  %470 = vmatpush.bf16.msra.mxu0 %v363
  %471 = vmatpush.bf16.msra.mxu0 %v362
  %472 = vmatpush.bf16.msra.mxu0 %v361
  %473 = vmatpush.bf16.msra.mxu0 %v360
  %474 = vmatpush.bf16.msra.mxu0 %v359
  %475 = vmatpush.bf16.msra.mxu0 %v358
  %476 = vmatpush.bf16.msra.mxu0 %v357
  %477 = vmatmul.bf16.gmra.mxu0 %v134
  %v478 = vpop.f32.mrf.mxu0
  %v479 = vadd.f32 %v466, %v478
  %v480 = vpop.f32.mrf.mxu0
  %481 = vdwg.mxu0
  %482 = vmatpush.bf16.msra.mxu0 %v372
  %483 = vmatpush.bf16.msra.mxu0 %v371
  %484 = vmatpush.bf16.msra.mxu0 %v370
  %485 = vmatpush.bf16.msra.mxu0 %v369
  %486 = vmatpush.bf16.msra.mxu0 %v368
  %487 = vmatpush.bf16.msra.mxu0 %v367
  %488 = vmatpush.bf16.msra.mxu0 %v366
  %489 = vmatpush.bf16.msra.mxu0 %v365
  %490 = vmatmul.bf16.gmra.mxu0 %v135
  %v491 = vpop.f32.mrf.mxu0
  %v492 = vadd.f32 %v479, %v491
  %v493 = vpop.f32.mrf.mxu0
  %494 = vdwg.mxu0
  %495 = vmatpush.bf16.msra.mxu0 %v380
  %496 = vmatpush.bf16.msra.mxu0 %v379
  %497 = vmatpush.bf16.msra.mxu0 %v378
  %498 = vmatpush.bf16.msra.mxu0 %v377
  %499 = vmatpush.bf16.msra.mxu0 %v376
  %500 = vmatpush.bf16.msra.mxu0 %v375
  %501 = vmatpush.bf16.msra.mxu0 %v374
  %502 = vmatpush.bf16.msra.mxu0 %v373
  %503 = vmatmul.bf16.gmra.mxu0 %v136
  %v504 = vpop.f32.mrf.mxu0
  %v505 = vadd.f32 %v492, %v504
  %v506 = vpop.f32.mrf.mxu0
  %507 = vdwg.mxu0
  %508 = vmatpush.bf16.msra.mxu0 %v388
  %509 = vmatpush.bf16.msra.mxu0 %v387
  %510 = vmatpush.bf16.msra.mxu0 %v386
  %511 = vmatpush.bf16.msra.mxu0 %v385
  %512 = vmatpush.bf16.msra.mxu0 %v384
  %513 = vmatpush.bf16.msra.mxu0 %v383
  %514 = vmatpush.bf16.msra.mxu0 %v382
  %515 = vmatpush.bf16.msra.mxu0 %v381
  %516 = vmatmul.bf16.gmra.mxu0 %v137
  %v517 = vpop.f32.mrf.mxu0
  %v518 = vadd.f32 %v505, %v517
  %v519 = vpop.f32.mrf.mxu0
  %520 = vdwg.mxu0
  %521 = vmatpush.bf16.msra.mxu0 0
  %522 = vmatpush.bf16.msra.mxu0 0
  %523 = vmatpush.bf16.msra.mxu0 0
  %524 = vmatpush.bf16.msra.mxu0 0
  %525 = vmatpush.bf16.msra.mxu0 0
  %526 = vmatpush.bf16.msra.mxu0 0
  %527 = vmatpush.bf16.msra.mxu0 0
  %528 = vmatpush.bf16.msra.mxu0 %v389
  %529 = vmatmul.bf16.gmra.mxu0 %v441
  %v530 = vpop.f32.mrf.mxu0
  %v531 = vadd.f32 %v518, %v530
  %v532 = vpop.f32.mrf.mxu0
  %533 = vdwg.mxu0
  %vm534 = vcmask 80896
  %v535 = vsel %vm534, %v531, -inf
  %536 = vmax.xlane.f32.xlu0 %v535
  %v537 = vpop.xlane.xlu0 %536
  %v538 = vsub.f32 %v531, %v537
  %v539 = vmul.f32 %v538, 1.442695
  %v540 = vpow.pop %v539
  %v541 = vsel %vm534, %v540, 0.0
  %542 = vadd.xlane.f32.xlu0 %v541
  %v543 = vpop.xlane.xlu0 %542
  %v544 = vlog2.pop %v543
  %v545 = vmul.f32 %v544, 0.6931472
  %v546 = vsub.f32 %v538, %v545
  %547 = vst.msk [vmem:[%s3] sm:$0xff] %vm534, %v546
  // Predicated region
  $region14: #{logistic_regression_forward.1} parent=0 // pred_check
    _
  $region15: #{logistic_regression_forward.1} parent=0 // pred_check_branch
    %549 = sbr.rel (0) target = $region17
  $region16: #{logistic_regression_forward.1} parent=0 // pred_region
    _
  $region17: #{logistic_regression_forward.1} parent=0 // pred_fallthru
    _
  // Predicated region
  $region18: #{logistic_regression_forward.1} parent=0 // pred_check
    _
  $region19: #{logistic_regression_forward.1} parent=0 // pred_check_branch
    %551 = sbr.rel (0) target = $region21
  $region20: #{logistic_regression_forward.1} parent=0 // pred_region
    _
  $region21: #{logistic_regression_forward.1} parent=0 // pred_fallthru
    _

</llo_original>
